<compile_context>
chip_gen: v7x
topology: tpu7x:2x2x1
jax: 0.10.0
libtpu: 0.0.40
codegen_flags: <defaults>
</compile_context>

<pallas_src>
import functools
import math

import jax
import jax.numpy as jnp
from jax.experimental import pallas as pl
from jax.experimental.pallas import tpu as pltpu


def _round_up(x, m):
    return ((x + m - 1) // m) * m


def _vmem_capacity_bytes():
    """Best-effort VMEM capacity query; conservative fallback if unavailable."""
    try:
        info = pltpu.get_tpu_info()
        cap = getattr(info, "vmem_capacity_bytes", None)
        if cap:
            return int(cap)
    except Exception:
        pass
    return 64 * 1024 * 1024  # assume the smallest (v7x-class) part


def _choose_tiling(B, T, P, Z, F, in_itemsize, out_itemsize):
    """Pick batch/query tiles, padded sizes and the VMEM limit per generation."""
    cap = _vmem_capacity_bytes()
    if cap <= 80 * 1024 * 1024:          # v7x-class: 64 MiB per TensorCore
        block_budget = 16 * 1024 * 1024
        vmem_limit = 48 * 1024 * 1024
    else:                                # v5e / v6e: 128 MiB physical VMEM
        block_budget = 40 * 1024 * 1024
        vmem_limit = 100 * 1024 * 1024

    sub = 8 if in_itemsize >= 4 else 16  # sublane tile (f32 vs bf16 packing)

    # Lane-dense output / score tile: pad P to >=128; prefer 256 alignment when
    # P already exceeds one MXU tile (v6e/v7x MXUs are 2x256^2).
    Pp = _round_up(P, 128) if P <= 128 else _round_up(P, 256)

    Tp0 = _round_up(T, sub)
    Tt = Tp0 if Tp0 <= 256 else 256      # query-row tile per grid step

    # Batch elements per grid step: aim for ~256 projection rows per matmul,
    # but keep >=2 grid steps when B >= 2 (v7x dual TC, pipeline depth).
    Bb = max(1, min(32, -(-256 // Tt)))
    if B >= 2:
        Bb = min(Bb, max(1, (B + 1) // 2))

    f_vmem = _round_up(F, 128)           # narrow feature dim still fills lane tiles in VMEM

    def est(bb, tt):
        x_b = bb * Z * Pp * f_vmem * in_itemsize        # key block (resident across T tiles)
        y_b = bb * Z * tt * f_vmem * in_itemsize        # query block
        o_b = bb * tt * Pp * out_itemsize               # output block
        tmp = 3 * bb * tt * Pp * 4                      # f32 score / exp temporaries
        return 2 * (x_b + y_b + o_b) + tmp              # double-buffered in/out

    while Bb > 1 and est(Bb, Tt) > block_budget:
        Bb -= 1
    while Tt > sub and est(Bb, Tt) > block_budget:
        Tt = max(sub, (Tt // 2 // sub) * sub)

    Tp = _round_up(T, Tt)
    Bp = _round_up(B, Bb)
    return Bb, Bp, Tt, Tp, Pp, vmem_limit


def _att_kernel(x_ref, y_ref, w_ref, out_ref, *, n_keys):
    """One (batch-tile, query-tile) grid step.

    x_ref:   (Bb, Z, Pp, F)  keys   (z-major layout)
    y_ref:   (Bb, Z, Tt, F)  queries
    w_ref:   (F, F)          fused, pre-scaled weight  Wq Wk^T / sqrt(d)
    out_ref: (Bb, Tt, Pp)    softmax over the key axis (padded keys masked)
    """
    bb, z_dim, pp, f = x_ref.shape
    tt = y_ref.shape[2]
    w = w_ref[...]

    s = jnp.zeros((bb, tt, pp), jnp.float32)
    for z in range(z_dim):  # static, typically small (1 for the 3D path)
        # ONE projection matmul over all Bb*Tt query rows (layout-preserving
        # reshape: tt is a multiple of the sublane tile).
        yz = y_ref[:, z, :, :].reshape(bb * tt, f)
        a = jnp.dot(yz, w, preferred_element_type=jnp.float32)
        a = a.astype(x_ref.dtype).reshape(bb, tt, f)
        # Batched score contraction over F: (Bb,Tt,F) x (Bb,Pp,F) -> (Bb,Tt,Pp).
        xz = x_ref[:, z, :, :]
        s = s + jax.lax.dot_general(
            a, xz,
            dimension_numbers=(((2,), (2,)), ((0,), (0,))),
            preferred_element_type=jnp.float32)

    # Mask padded key columns so they carry no softmax mass.
    if pp != n_keys:
        col = jax.lax.broadcasted_iota(jnp.int32, s.shape, 2)
        s = jnp.where(col < n_keys, s, -jnp.inf)

    # Numerically stable softmax over the key axis (always f32).
    m = jnp.max(s, axis=-1, keepdims=True)
    e = jnp.exp(s - m)
    denom = jnp.sum(e, axis=-1, keepdims=True)
    inv = pl.reciprocal(denom, approx=True)   # EUP slot (nearly free)
    inv = inv * (2.0 - denom * inv)           # one Newton step -> ~f32 accuracy
    out_ref[...] = (e * inv).astype(out_ref.dtype)


def att_forward(x, y, wq, wk, d, *,
                compute_dtype=jnp.float32, out_dtype=jnp.float32):
    """Pallas implementation of ATT.forward(x, y)."""
    if x.ndim == 3:
        B, P, F = x.shape
        T = y.shape[1]
        Z = 1
        xk = x[:, None]                          # (B, 1, P, F)
        yq = y[:, None]                          # (B, 1, T, F)
    elif x.ndim == 4:
        B, P, Z, F = x.shape                     # keys: (B, U, Z, F)
        T = y.shape[1]
        xk = jnp.transpose(x, (0, 2, 1, 3))      # (B, Z, P, F)
        yq = jnp.transpose(y, (0, 2, 1, 3))      # (B, Z, T, F)
    else:
        raise ValueError("x must be rank 3 or 4")

    cdt = jnp.dtype(compute_dtype)
    odt = jnp.dtype(out_dtype)

    # Fuse both projections and the 1/sqrt(d) scale into one (F, F) weight:
    #   Q K^T = (y Wq)(x Wk)^T = y (Wq Wk^T / sqrt(d)) x^T
    w = ((wq @ wk.T) * (1.0 / math.sqrt(float(d)))).astype(cdt)

    Bb, Bp, Tt, Tp, Pp, vmem_limit = _choose_tiling(
        B, T, P, Z, F, cdt.itemsize, odt.itemsize)

    xk = jnp.pad(xk.astype(cdt), ((0, Bp - B), (0, 0), (0, Pp - P), (0, 0)))
    yq = jnp.pad(yq.astype(cdt), ((0, Bp - B), (0, 0), (0, Tp - T), (0, 0)))

    kernel = functools.partial(_att_kernel, n_keys=P)
    out = pl.pallas_call(
        kernel,
        out_shape=jax.ShapeDtypeStruct((Bp, Tp, Pp), odt),
        grid=(Bp // Bb, Tp // Tt),
        in_specs=[
            pl.BlockSpec((Bb, Z, Pp, F), lambda b, t: (b, 0, 0, 0)),   # keys (resident over t)
            pl.BlockSpec((Bb, Z, Tt, F), lambda b, t: (b, 0, t, 0)),   # queries
            pl.BlockSpec((F, F), lambda b, t: (0, 0)),                 # fused weight
        ],
        out_specs=pl.BlockSpec((Bb, Tt, Pp), lambda b, t: (b, t, 0)),
        compiler_params=pltpu.CompilerParams(
            dimension_semantics=("parallel", "parallel"),
            vmem_limit_bytes=vmem_limit),
    )(xk, yq, w)
    return out[:B, :T, :P]


def att_reference(x, y, wq, wk, d):
    """Pure-JAX reference mirroring the PyTorch forward exactly (unfused)."""
    if x.ndim == 3:
        q = jnp.einsum("btf,fd->btd", y, wq)
        k = jnp.einsum("bpf,fd->bpd", x, wk)
        att = jnp.einsum("btd,bpd->btp", q, k) / math.sqrt(float(d))
        return jax.nn.softmax(att, axis=-1)
    else:
        q = jnp.einsum("bvzf,fd->bvzd", y, wq)
        k = jnp.einsum("buzf,fd->buzd", x, wk)
        att = jnp.einsum("bvzd,buzd->bvu", q, k) / math.sqrt(float(d))
        return jax.nn.softmax(att, axis=2)


if __name__ == "__main__":
    key = jax.random.PRNGKey(0)
    c_in = 8
    d = 16

    k1, k2, k3, k4, k5, k6 = jax.random.split(key, 6)
    # Deterministic "Linear" weights, stored as (c_in, d) = torch weight.T
    wq = jax.random.normal(k1, (c_in, d), dtype=jnp.float32) * 0.1
    wk = jax.random.normal(k2, (c_in, d), dtype=jnp.float32) * 0.1

    # ---- 3D case: x (B, P, F), y (B, T, F) ----
    B, T, P = 2, 8, 8
    x3 = jax.random.normal(k3, (B, P, c_in), dtype=jnp.float32)
    y3 = jax.random.normal(k4, (B, T, c_in), dtype=jnp.float32)
    out3 = att_forward(x3, y3, wq, wk, d)
    jax.block_until_ready(out3)
    ref3 = att_reference(x3, y3, wq, wk, d)
    assert out3.shape == (B, T, P)
    assert jnp.allclose(out3, ref3, atol=1e-4, rtol=1e-4)

    # ---- 4D case: x (B, U, Z, F), y (B, V, Z, F) ----
    V, U, Z = 4, 4, 3
    x4 = jax.random.normal(k5, (B, U, Z, c_in), dtype=jnp.float32)
    y4 = jax.random.normal(k6, (B, V, Z, c_in), dtype=jnp.float32)
    out4 = att_forward(x4, y4, wq, wk, d)
    jax.block_until_ready(out4)
    ref4 = att_reference(x4, y4, wq, wk, d)
    assert out4.shape == (B, V, U)
    assert jnp.allclose(out4, ref4, atol=1e-4, rtol=1e-4)

    # ---- bf16 MXU path (all generations): bf16 operands, f32 softmax ----
    out4_bf16 = att_forward(x4, y4, wq, wk, d, compute_dtype=jnp.bfloat16)
    jax.block_until_ready(out4_bf16)
    assert jnp.allclose(out4_bf16, ref4, atol=5e-2, rtol=5e-2)

    # ---- bf16 output path (halves writeback if downstream tolerates it) ----
    out3_bf16o = att_forward(x3, y3, wq, wk, d, out_dtype=jnp.bfloat16)
    jax.block_until_ready(out3_bf16o)
    assert jnp.allclose(out3_bf16o.astype(jnp.float32), ref3, atol=5e-2, rtol=5e-2)

    print("KERNEL_OK")
</pallas_src>

<mosaic_0001>
module attributes {stable_mosaic.version = 11 : i64} {
  func.func @_att_kernel(%arg0: i32, %arg1: i32, %arg2: memref<1x1x128x8xf32, #tpu.memory_space<vmem>>, %arg3: memref<1x1x8x8xf32, #tpu.memory_space<vmem>>, %arg4: memref<8x8xf32, #tpu.memory_space<vmem>>, %arg5: memref<1x8x128xf32, #tpu.memory_space<vmem>>) attributes {dimension_semantics = [#tpu.dimension_semantics<parallel>, #tpu.dimension_semantics<parallel>], iteration_bounds = array<i64: 2, 1>, scalar_prefetch = 0 : i64, scratch_operands = 0 : i64, tpu.core_type = #tpu.core_type<tc>, window_params = [{transform_indices = @transform_0, window_bounds = array<i64: 1, 1, 128, 8>}, {transform_indices = @transform_1, window_bounds = array<i64: 1, 1, 8, 8>}, {pipeline_mode = #tpu.pipeline_mode<synchronous>, transform_indices = @transform_2, window_bounds = array<i64: 8, 8>}, {transform_indices = @transform_3, window_bounds = array<i64: 1, 8, 128>}]} {
    %c0 = arith.constant 0 : index
    %c0_0 = arith.constant 0 : index
    %0 = vector.load %arg4[%c0, %c0_0] : memref<8x8xf32, #tpu.memory_space<vmem>>, vector<8x8xf32>
    %cst = arith.constant 0.000000e+00 : f32
    %1 = vector.broadcast %cst : f32 to vector<1x8x128xf32>
    %c0_1 = arith.constant 0 : index
    %c0_2 = arith.constant 0 : index
    %c0_3 = arith.constant 0 : index
    %c0_4 = arith.constant 0 : index
    %2 = vector.load %arg3[%c0_1, %c0_2, %c0_3, %c0_4] : memref<1x1x8x8xf32, #tpu.memory_space<vmem>>, vector<1x1x8x8xf32>
    %3 = vector.shape_cast %2 : vector<1x1x8x8xf32> to vector<1x8x8xf32>
    %4 = vector.shape_cast %3 : vector<1x8x8xf32> to vector<8x8xf32>
    %cst_5 = arith.constant dense<0.000000e+00> : vector<8x8xf32>
    %5 = tpu.matmul %4, %0, %cst_5 {dimension_numbers = #tpu.dot_dimension_numbers<[1], [0], [0], [1], [0, 0, 1, 1], [], []>} : vector<8x8xf32>, vector<8x8xf32>, vector<8x8xf32> -> vector<8x8xf32>
    %6 = vector.shape_cast %5 : vector<8x8xf32> to vector<1x8x8xf32>
    %c0_6 = arith.constant 0 : index
    %c0_7 = arith.constant 0 : index
    %c0_8 = arith.constant 0 : index
    %c0_9 = arith.constant 0 : index
    %7 = vector.load %arg2[%c0_6, %c0_7, %c0_8, %c0_9] : memref<1x1x128x8xf32, #tpu.memory_space<vmem>>, vector<1x1x128x8xf32>
    %8 = vector.shape_cast %7 : vector<1x1x128x8xf32> to vector<1x128x8xf32>
    %cst_10 = arith.constant dense<0.000000e+00> : vector<1x8x128xf32>
    %9 = tpu.matmul %6, %8, %cst_10 {dimension_numbers = #tpu.dot_dimension_numbers<[2], [2], [1], [1], [0, 0, 0, 1, 1, 1], [0], [0]>} : vector<1x8x8xf32>, vector<1x128x8xf32>, vector<1x8x128xf32> -> vector<1x8x128xf32>
    %10 = arith.addf %1, %9 : vector<1x8x128xf32>
    %11 = tpu.iota {dimensions = array<i32: 2>} : vector<1x8x128xi32>
    %c8_i32 = arith.constant 8 : i32
    %12 = vector.broadcast %c8_i32 : i32 to vector<1x8x128xi32>
    %13 = arith.cmpi slt, %11, %12 : vector<1x8x128xi32>
    %cst_11 = arith.constant 0xFF800000 : f32
    %14 = vector.broadcast %cst_11 : f32 to vector<1x8x128xf32>
    %15 = arith.select %13, %10, %14 : vector<1x8x128xi1>, vector<1x8x128xf32>
    %cst_12 = arith.constant dense<0xFF800000> : vector<1x8xf32>
    %16 = vector.multi_reduction <maximumf>, %15, %cst_12 [2] : vector<1x8x128xf32> to vector<1x8xf32>
    %17 = vector.shape_cast %16 : vector<1x8xf32> to vector<1x8x1xf32>
    %18 = vector.broadcast %17 : vector<1x8x1xf32> to vector<1x8x128xf32>
    %19 = arith.subf %15, %18 : vector<1x8x128xf32>
    %20 = math.exp %19 : vector<1x8x128xf32>
    %cst_13 = arith.constant dense<0.000000e+00> : vector<1x8xf32>
    %21 = vector.multi_reduction <add>, %20, %cst_13 [2] : vector<1x8x128xf32> to vector<1x8xf32>
    %22 = vector.shape_cast %21 : vector<1x8xf32> to vector<1x8x1xf32>
    %23 = tpu.reciprocal %22 {approx = true} : vector<1x8x1xf32> -> vector<1x8x1xf32>
    %24 = arith.mulf %22, %23 : vector<1x8x1xf32>
    %cst_14 = arith.constant 2.000000e+00 : f32
    %25 = vector.broadcast %cst_14 : f32 to vector<1x8x1xf32>
    %26 = arith.subf %25, %24 : vector<1x8x1xf32>
    %27 = arith.mulf %23, %26 : vector<1x8x1xf32>
    %28 = vector.broadcast %27 : vector<1x8x1xf32> to vector<1x8x128xf32>
    %29 = arith.mulf %20, %28 : vector<1x8x128xf32>
    %c0_15 = arith.constant 0 : index
    %c0_16 = arith.constant 0 : index
    %c0_17 = arith.constant 0 : index
    %30 = vector.load %arg5[%c0_15, %c0_16, %c0_17] : memref<1x8x128xf32, #tpu.memory_space<vmem>>, vector<1x8x128xf32>
    tpu.vector_store %arg5[%c0_15, %c0_16, %c0_17], %29 {strides = array<i32>} : memref<1x8x128xf32, #tpu.memory_space<vmem>>, vector<1x8x128xf32>,
    return
  }
  func.func @transform_0(%arg0: i32, %arg1: i32) -> (i32, i32, i32, i32) {
    %c0_i32 = arith.constant 0 : i32
    %c0_i32_0 = arith.constant 0 : i32
    %c0_i32_1 = arith.constant 0 : i32
    %c0_i32_2 = arith.constant 0 : i32
    return %arg0, %c0_i32, %c0_i32_0, %c0_i32_1 : i32, i32, i32, i32
  }
  func.func @transform_1(%arg0: i32, %arg1: i32) -> (i32, i32, i32, i32) {
    %c0_i32 = arith.constant 0 : i32
    %c0_i32_0 = arith.constant 0 : i32
    %c0_i32_1 = arith.constant 0 : i32
    return %arg0, %c0_i32, %arg1, %c0_i32_0 : i32, i32, i32, i32
  }
  func.func @transform_2(%arg0: i32, %arg1: i32) -> (i32, i32) {
    %c0_i32 = arith.constant 0 : i32
    %c0_i32_0 = arith.constant 0 : i32
    %c0_i32_1 = arith.constant 0 : i32
    return %c0_i32, %c0_i32_0 : i32, i32
  }
  func.func @transform_3(%arg0: i32, %arg1: i32) -> (i32, i32, i32) {
    %c0_i32 = arith.constant 0 : i32
    %c0_i32_0 = arith.constant 0 : i32
    return %arg0, %arg1, %c0_i32 : i32, i32, i32
  }
}

</mosaic_0001>

<llo_original>
// kernel: tpu_custom_call.1
$region0: #{tpu_custom_call.1}
  #allocation0 [shape = 'u32[]', space=smem, size = 0x4, offset = 0x4, fixed_abs, tag = 'smem constant byte address 0x4 - core index']
  #allocation1 [shape = 'u32[144,128]{1,0:T(1,128)}', space=vmem, size = 0x12000, scoped, tag = 'internal scratch']
  %s0 = inlined_call_operand.vmem [shape: f32[2,1,128,8], index: 0, kind: input, shape index: {}]
  %s1 = inlined_call_operand.vmem [shape: f32[2,1,8,8], index: 1, kind: input, shape index: {}]
  %s2 = inlined_call_operand.vmem [shape: f32[8,8], index: 2, kind: input, shape index: {}]
  %s3 = inlined_call_operand.hbm [shape: f32[2,8,128], index: 3, kind: output, shape index: {}]
  %s4 = sld [smem:[#allocation0]]
  $region45: #{tpu_custom_call.1} parent=0
    _
  %s6 = ssub.s32 1, %s4
  %s7 = scalar_select 0, %s6, %s4
  $region1: #{tpu_custom_call.1} parent=0
    #allocation2 [shape = 'u8[8192]{0}', space=vmem, size = 0x2000, scoped, tag = 'output window, operand 0']
    #allocation3 [shape = 's32[2]{0}', space=sflag, size = 0x8, scoped, tag = 'scoped memory for tpu_custom_call.1']
    %8 = vsyncpa [#allocation3], 0
    %s9 = scalar_lea.sflag [#allocation3], 1
    %10 = vsyncpa %s9, 0
    loop: start=0, step=1, limit=4
    $region2: #{tpu_custom_call.1} parent=1 // loop_pre_header
      _
    $region3: #{tpu_custom_call.1} parent=1 // loop_header
      %s12 = sphi 0, %s16
      %p13 = scmp.ge.s32.totalorder %s12, 4
      %s19 = sphi 0, %s31
      %s20 = sphi 0, %s27
      %s21 = sphi 0, %s19
      %s22 = sphi 0, %s20
      %s23 = sphi 0, %s21
      %s24 = sphi 0, %s22
      %s34 = sphi 0, %s36
      %s37 = sphi 0, %s34
      %s38 = sphi 0, %s37
      %s54 = sphi 0, %s38
      %s62 = sphi 0, %s64
      %s65 = sphi 0, %s62
      %s66 = sphi 0, %s65
      %s82 = sphi 0, %s66
      %s86 = sphi 0, %s86
      %s88 = sphi 0, %s86
      %s89 = sphi 0, %s88
      %s103 = sphi 0, %s89
      %s111 = sphi 0, %s113
      %s114 = sphi 0, %s111
      %s115 = sphi 0, %s114
      %s131 = sphi 0, %s115
    $region4: #{tpu_custom_call.1} parent=1 // loop_header_branch
      %15 = sbr.rel (%p13) target = $region8
    $region5: #{tpu_custom_call.1} parent=1 // loop_body
      %s17 = ssub.s32 %s12, 1
      %s18 = ssub.s32 %s12, 2
      %s25 = sadd.s32 1, %s20
      %p26 = scmp.ge.s32.totalorder %s25, 1
      %s27 = scalar_select %p26, 0, %s25
      %s28 = sadd.s32 1, %s19
      %s29 = scalar_select %p26, %s28, %s19
      %p30 = scmp.ge.s32.totalorder %s29, 2
      %s31 = scalar_select %p30, 0, %s29
      %s32 = ssub.s32 %s19, %s31
      %p33 = scmp.eq.s32.totalorder %s32, 0
      %s35 = sadd.s32 %s34, 1
      %s36 = scalar_select %p33, %s34, %s35
      %p39 = pneg %p33
      %p40 = scmp.eq.s32.totalorder %s12, 1
      %p41 = por %p39, %p40
      %p42 = scmp.ne.s32.totalorder %s34, %s37
      %p43 = scmp.eq.s32.totalorder %s12, 0
      %p44 = por %p42, %p43
      %p45 = scmp.ne.s32.totalorder %s34, %s37
      %p46 = scmp.eq.s32.totalorder %s17, 1
      %p47 = por %p45, %p46
      %p48 = scmp.ne.s32.totalorder %s37, %s38
      %p49 = scmp.eq.s32.totalorder %s17, 0
      %p50 = por %p48, %p49
      %p51 = scmp.ne.s32.totalorder %s37, %s38
      %p52 = scmp.eq.s32.totalorder %s18, 1
      %p53 = por %p51, %p52
      %p55 = scmp.ne.s32.totalorder %s38, %s54
      %p56 = scmp.eq.s32.totalorder %s18, 0
      %p57 = por %p55, %p56
      %s58 = ssub.s32 %s19, %s31
      %s59 = ssub.s32 %s20, %s27
      %s60 = sor.u32 %s58, %s59
      %p61 = scmp.eq.s32.totalorder %s60, 0
      %s63 = sadd.s32 %s62, 1
      %s64 = scalar_select %p61, %s62, %s63
      %p67 = pneg %p61
      %p68 = scmp.eq.s32.totalorder %s12, 1
      %p69 = por %p67, %p68
      %p70 = scmp.ne.s32.totalorder %s62, %s65
      %p71 = scmp.eq.s32.totalorder %s12, 0
      %p72 = por %p70, %p71
      %p73 = scmp.ne.s32.totalorder %s62, %s65
      %p74 = scmp.eq.s32.totalorder %s17, 1
      %p75 = por %p73, %p74
      %p76 = scmp.ne.s32.totalorder %s65, %s66
      %p77 = scmp.eq.s32.totalorder %s17, 0
      %p78 = por %p76, %p77
      %p79 = scmp.ne.s32.totalorder %s65, %s66
      %p80 = scmp.eq.s32.totalorder %s18, 1
      %p81 = por %p79, %p80
      %p83 = scmp.ne.s32.totalorder %s66, %s82
      %p84 = scmp.eq.s32.totalorder %s18, 0
      %p85 = por %p83, %p84
      %s87 = sadd.s32 %s86, 1
      %p90 = scmp.eq.s32.totalorder %s12, 1
      %p91 = scmp.ne.s32.totalorder %s86, %s88
      %p92 = scmp.eq.s32.totalorder %s12, 0
      %p93 = por %p91, %p92
      %p94 = scmp.ne.s32.totalorder %s86, %s88
      %p95 = scmp.eq.s32.totalorder %s17, 1
      %p96 = por %p94, %p95
      %p97 = scmp.ne.s32.totalorder %s88, %s89
      %p98 = scmp.eq.s32.totalorder %s17, 0
      %p99 = por %p97, %p98
      %p100 = scmp.ne.s32.totalorder %s88, %s89
      %p101 = scmp.eq.s32.totalorder %s18, 1
      %p102 = por %p100, %p101
      %p104 = scmp.ne.s32.totalorder %s89, %s103
      %p105 = scmp.eq.s32.totalorder %s18, 0
      %p106 = por %p104, %p105
      %s107 = ssub.s32 %s19, %s31
      %s108 = ssub.s32 %s20, %s27
      %s109 = sor.u32 %s107, %s108
      %p110 = scmp.eq.s32.totalorder %s109, 0
      %s112 = sadd.s32 %s111, 1
      %s113 = scalar_select %p110, %s111, %s112
      %p116 = pneg %p110
      %p117 = scmp.eq.s32.totalorder %s12, 1
      %p118 = por %p116, %p117
      %p119 = scmp.ne.s32.totalorder %s111, %s114
      %p120 = scmp.eq.s32.totalorder %s12, 0
      %p121 = por %p119, %p120
      %p122 = scmp.ne.s32.totalorder %s111, %s114
      %p123 = scmp.eq.s32.totalorder %s17, 1
      %p124 = por %p122, %p123
      %p125 = scmp.ne.s32.totalorder %s114, %s115
      %p126 = scmp.eq.s32.totalorder %s17, 0
      %p127 = por %p125, %p126
      %p128 = scmp.ne.s32.totalorder %s114, %s115
      %p129 = scmp.eq.s32.totalorder %s18, 1
      %p130 = por %p128, %p129
      %p132 = scmp.ne.s32.totalorder %s115, %s131
      %p133 = scmp.eq.s32.totalorder %s18, 0
      %p134 = por %p132, %p133
      %p135 = scmp.le.s32.totalorder 1, %s12
      %p136 = scmp.lt.s32.totalorder %s12, 3
      %p137 = pnand %p135, %p136
      %p138 = pneg %p137
      // Predicated region
      $region9: #{tpu_custom_call.1} parent=5 // pred_check
        _
      $region10: #{tpu_custom_call.1} parent=5 // pred_check_branch
        %140 = sbr.rel (%p137) target = $region12
      $region11: #{tpu_custom_call.1} parent=5 // pred_region
        %s141 = ssub.s32 %s12, 1
        // Predicated region
        $region13: #{tpu_custom_call.1} parent=11 // pred_check
          %p142 = pneg %p99
        $region14: #{tpu_custom_call.1} parent=11 // pred_check_branch
          %144 = sbr.rel (%p142) target = $region16
        $region15: #{tpu_custom_call.1} parent=11 // pred_region
          _
        $region16: #{tpu_custom_call.1} parent=11 // pred_fallthru
          _
      $region12: #{tpu_custom_call.1} parent=5 // pred_fallthru
        _
      %p145 = scmp.lt.s32.totalorder %s12, 2
      // Predicated region
      $region17: #{tpu_custom_call.1} parent=5 // pred_check
        %p146 = pneg %p145
      $region18: #{tpu_custom_call.1} parent=5 // pred_check_branch
        %148 = sbr.rel (%p146) target = $region20
      $region19: #{tpu_custom_call.1} parent=5 // pred_region
        // Predicated region
        $region21: #{tpu_custom_call.1} parent=19 // pred_check
          %p149 = pneg %p44
        $region22: #{tpu_custom_call.1} parent=19 // pred_check_branch
          %151 = sbr.rel (%p149) target = $region24
        $region23: #{tpu_custom_call.1} parent=19 // pred_region
          %p152 = scmp.lt.s32.totalorder %s19, 1
          %s153 = scalar_select %p152, %s19, 1
          %s154 = smul.addr %s153, 16
          %s155 = smul.addr %s154, 8
          %s156 = scalar_lea.vmem %s0, %s155
        $region24: #{tpu_custom_call.1} parent=19 // pred_fallthru
          _
        // Predicated region
        $region25: #{tpu_custom_call.1} parent=19 // pred_check
          %p157 = pneg %p72
        $region26: #{tpu_custom_call.1} parent=19 // pred_check_branch
          %159 = sbr.rel (%p157) target = $region28
        $region27: #{tpu_custom_call.1} parent=19 // pred_region
          %p160 = scmp.lt.s32.totalorder %s19, 1
          %s161 = scalar_select %p160, %s19, 1
          %p162 = scmp.lt.s32.totalorder %s20, 0
          %s163 = scalar_select %p162, %s20, 0
          %s164 = sadd.s32 %s163, %s161
          %s165 = smul.addr %s164, 8
          %s166 = scalar_lea.vmem %s1, %s165
        $region28: #{tpu_custom_call.1} parent=19 // pred_fallthru
          _
      $region20: #{tpu_custom_call.1} parent=5 // pred_fallthru
        _
      %p167 = scmp.le.s32.totalorder 1, %s12
      %p168 = scmp.lt.s32.totalorder %s12, 3
      %p169 = pnand %p167, %p168
      %p170 = pneg %p169
      // Predicated region
      $region29: #{tpu_custom_call.1} parent=5 // pred_check
        _
      $region30: #{tpu_custom_call.1} parent=5 // pred_check_branch
        %172 = sbr.rel (%p169) target = $region32
      $region31: #{tpu_custom_call.1} parent=5 // pred_region
        %s173 = ssub.s32 %s12, 1
        %p174 = scmp.lt.s32.totalorder %s21, 1
        %s175 = scalar_select %p174, %s21, 1
        %s176 = smul.addr %s175, 16
        %s177 = smul.addr %s176, 8
        %s178 = scalar_lea.vmem %s0, %s177
        %p179 = pneg %p50
        %p180 = pneg %p47
        %p181 = scmp.lt.s32.totalorder %s21, 1
        %s182 = scalar_select %p181, %s21, 1
        %p183 = scmp.lt.s32.totalorder %s22, 0
        %s184 = scalar_select %p183, %s22, 0
        %s185 = sadd.s32 %s184, %s182
        %s186 = smul.addr %s185, 8
        %s187 = scalar_lea.vmem %s1, %s186
        %p188 = pneg %p78
        %p189 = pneg %p75
        %p190 = pneg %p99
        %p191 = pneg %p96
        %p192 = pneg %p127
        %p193 = pneg %p124
        %s194 = sand.u32 %s114, 1
        %s195 = scalar_lea.sflag [#allocation3], %s194
        %s196 = sand.u32 %s114, 1
        %s197 = smul.addr %s196, 8
        %s198 = scalar_lea.vmem [#allocation2], %s197
        %p199 = scmp.lt.s32.totalorder %s21, 1
        %s200 = scalar_select %p199, %s21, 1
        %s201 = smul.addr %s200, 16
        %s202 = smul.addr %s201, 8
        %s203 = scalar_lea.vmem %s0, %s202
        %p204 = scmp.lt.s32.totalorder %s21, 1
        %s205 = scalar_select %p204, %s21, 1
        %p206 = scmp.lt.s32.totalorder %s22, 0
        %s207 = scalar_select %p206, %s22, 0
        %s208 = sadd.s32 %s207, %s205
        %s209 = smul.addr %s208, 8
        %s210 = scalar_lea.vmem %s1, %s209
        %v211 = vld [vmem:[%s2] sm:$0xff]
        %v212 = vld [vmem:[%s210] sm:$0xff]
        %vm213 = vcmask 64512
        %v215 = vsel %vm213, %v212, 0
        %217 = vmatprep.subr.mxu0 0.0
        %218 = vmatpush1.msra.mxu0 %v211
        %219 = vmatprep.subr.mxu0 0.0
        %220 = vmatpush1.msra.mxu0 0.0
        %221 = vmatprep.subr.mxu0 0.0
        %222 = vmatpush1.msra.mxu0 0.0
        %223 = vmatprep.subr.mxu0 0.0
        %224 = vmatpush1.msra.mxu0 0.0
        %225 = vmatprep.subr.mxu0 0.0
        %226 = vmatpush1.msra.mxu0 0.0
        %227 = vmatprep.subr.mxu0 0.0
        %228 = vmatpush1.msra.mxu0 0.0
        %229 = vmatprep.subr.mxu0 0.0
        %230 = vmatpush1.msra.mxu0 0.0
        %231 = vmatprep.subr.mxu0 0.0
        %232 = vmatpush1.msra.mxu0 0.0
        %233 = vmatprep.subr.mxu0 0.0
        %234 = vmatpush1.msra.mxu0 0.0
        %235 = vmatprep.subr.mxu0 0.0
        %236 = vmatpush1.msra.mxu0 0.0
        %237 = vmatprep.subr.mxu0 0.0
        %238 = vmatpush1.msra.mxu0 0.0
        %239 = vmatprep.subr.mxu0 0.0
        %240 = vmatpush1.msra.mxu0 0.0
        %241 = vmatprep.subr.mxu0 0.0
        %242 = vmatpush1.msra.mxu0 0.0
        %243 = vmatprep.subr.mxu0 0.0
        %244 = vmatpush1.msra.mxu0 0.0
        %245 = vmatprep.subr.mxu0 0.0
        %246 = vmatpush1.msra.mxu0 0.0
        %247 = vmatprep.subr.mxu0 0.0
        %248 = vmatpush1.msra.mxu0 0.0
        %249 = vmatprep.subr.mxu0 0.0
        %250 = vmatpush1.msra.mxu0 0.0
        %251 = vmatprep.subr.mxu0 0.0
        %252 = vmatpush1.msra.mxu0 0.0
        %253 = vmatprep.subr.mxu0 0.0
        %254 = vmatpush1.msra.mxu0 0.0
        %255 = vmatprep.subr.mxu0 0.0
        %256 = vmatpush1.msra.mxu0 0.0
        %257 = vmatprep.subr.mxu0 0.0
        %258 = vmatpush1.msra.mxu0 0.0
        %259 = vmatprep.subr.mxu0 0.0
        %260 = vmatpush1.msra.mxu0 0.0
        %261 = vmatprep.subr.mxu0 0.0
        %262 = vmatpush1.msra.mxu0 0.0
        %263 = vmatprep.subr.mxu0 0.0
        %264 = vmatpush1.msra.mxu0 0.0
        %265 = vmatprep.subr.mxu0 0.0
        %266 = vmatpush1.msra.mxu0 0.0
        %267 = vmatprep.subr.mxu0 0.0
        %268 = vmatpush1.msra.mxu0 0.0
        %269 = vmatprep.subr.mxu0 0.0
        %270 = vmatpush1.msra.mxu0 0.0
        %271 = vmatprep.subr.mxu0 0.0
        %272 = vmatpush1.msra.mxu0 0.0
        %273 = vmatprep.subr.mxu0 0.0
        %274 = vmatpush1.msra.mxu0 0.0
        %275 = vmatprep.subr.mxu0 0.0
        %276 = vmatpush1.msra.mxu0 0.0
        %277 = vmatprep.subr.mxu0 0.0
        %278 = vmatpush1.msra.mxu0 0.0
        %279 = vmatprep.subr.mxu0 0.0
        %280 = vmatpush1.msra.mxu0 0.0
        %281 = vmatprep.mubr.f32.mxu0 0.0
        %282 = vmatmul.mubr.f32.gmra.mrb[0].mxu0 %v215
        %v283 = vpop.f32.mrb[0].mxu0
        %v284 = vadd.f32 0.0, %v283
        %v285 = vpop.f32.mrb[0].mxu0
        %286 = vdwg.mxu0
        %v287 = vld [vmem:[%s203] sm:$0xff]
        %v288 = vld [vmem:[%s203 + $0x8] sm:$0xff]
        %v289 = vld [vmem:[%s203 + $0x10] sm:$0xff]
        %v290 = vld [vmem:[%s203 + $0x18] sm:$0xff]
        %v291 = vld [vmem:[%s203 + $0x20] sm:$0xff]
        %v292 = vld [vmem:[%s203 + $0x28] sm:$0xff]
        %v293 = vld [vmem:[%s203 + $0x30] sm:$0xff]
        %v294 = vld [vmem:[%s203 + $0x38] sm:$0xff]
        %v295 = vld [vmem:[%s203 + $0x40] sm:$0xff]
        %v296 = vld [vmem:[%s203 + $0x48] sm:$0xff]
        %v297 = vld [vmem:[%s203 + $0x50] sm:$0xff]
        %v298 = vld [vmem:[%s203 + $0x58] sm:$0xff]
        %v299 = vld [vmem:[%s203 + $0x60] sm:$0xff]
        %v300 = vld [vmem:[%s203 + $0x68] sm:$0xff]
        %v301 = vld [vmem:[%s203 + $0x70] sm:$0xff]
        %v302 = vld [vmem:[%s203 + $0x78] sm:$0xff]
        %v304 = vsel %vm213, %v284, 0
        %v307 = vsel %vm213, %v287, 0
        %v310 = vsel %vm213, %v288, 0
        %v313 = vsel %vm213, %v289, 0
        %v316 = vsel %vm213, %v290, 0
        %v319 = vsel %vm213, %v291, 0
        %v322 = vsel %vm213, %v292, 0
        %v325 = vsel %vm213, %v293, 0
        %v328 = vsel %vm213, %v294, 0
        %v331 = vsel %vm213, %v295, 0
        %v334 = vsel %vm213, %v296, 0
        %v337 = vsel %vm213, %v297, 0
        %v340 = vsel %vm213, %v298, 0
        %v343 = vsel %vm213, %v299, 0
        %v346 = vsel %vm213, %v300, 0
        %v349 = vsel %vm213, %v301, 0
        %v352 = vsel %vm213, %v302, 0
        %354 = vmatprep.subr.mxu0 0.0
        %355 = vmatpush1.xpose.msra.mxu0 %v307
        %356 = vmatprep.subr.mxu0 0.0
        %357 = vmatpush1.xpose.msra.mxu0 %v310
        %358 = vmatprep.subr.mxu0 0.0
        %359 = vmatpush1.xpose.msra.mxu0 %v313
        %360 = vmatprep.subr.mxu0 0.0
        %361 = vmatpush1.xpose.msra.mxu0 %v316
        %362 = vmatprep.subr.mxu0 0.0
        %363 = vmatpush1.xpose.msra.mxu0 %v319
        %364 = vmatprep.subr.mxu0 0.0
        %365 = vmatpush1.xpose.msra.mxu0 %v322
        %366 = vmatprep.subr.mxu0 0.0
        %367 = vmatpush1.xpose.msra.mxu0 %v325
        %368 = vmatprep.subr.mxu0 0.0
        %369 = vmatpush1.xpose.msra.mxu0 %v328
        %370 = vmatprep.subr.mxu0 0.0
        %371 = vmatpush1.xpose.msra.mxu0 %v331
        %372 = vmatprep.subr.mxu0 0.0
        %373 = vmatpush1.xpose.msra.mxu0 %v334
        %374 = vmatprep.subr.mxu0 0.0
        %375 = vmatpush1.xpose.msra.mxu0 %v337
        %376 = vmatprep.subr.mxu0 0.0
        %377 = vmatpush1.xpose.msra.mxu0 %v340
        %378 = vmatprep.subr.mxu0 0.0
        %379 = vmatpush1.xpose.msra.mxu0 %v343
        %380 = vmatprep.subr.mxu0 0.0
        %381 = vmatpush1.xpose.msra.mxu0 %v346
        %382 = vmatprep.subr.mxu0 0.0
        %383 = vmatpush1.xpose.msra.mxu0 %v349
        %384 = vmatprep.subr.mxu0 0.0
        %385 = vmatpush1.xpose.msra.mxu0 %v352
        %386 = vmatprep.subr.mxu0 0.0
        %387 = vmatpush1.xpose.msra.mxu0 0.0
        %388 = vmatprep.subr.mxu0 0.0
        %389 = vmatpush1.xpose.msra.mxu0 0.0
        %390 = vmatprep.subr.mxu0 0.0
        %391 = vmatpush1.xpose.msra.mxu0 0.0
        %392 = vmatprep.subr.mxu0 0.0
        %393 = vmatpush1.xpose.msra.mxu0 0.0
        %394 = vmatprep.subr.mxu0 0.0
        %395 = vmatpush1.xpose.msra.mxu0 0.0
        %396 = vmatprep.subr.mxu0 0.0
        %397 = vmatpush1.xpose.msra.mxu0 0.0
        %398 = vmatprep.subr.mxu0 0.0
        %399 = vmatpush1.xpose.msra.mxu0 0.0
        %400 = vmatprep.subr.mxu0 0.0
        %401 = vmatpush1.xpose.msra.mxu0 0.0
        %402 = vmatprep.subr.mxu0 0.0
        %403 = vmatpush1.xpose.msra.mxu0 0.0
        %404 = vmatprep.subr.mxu0 0.0
        %405 = vmatpush1.xpose.msra.mxu0 0.0
        %406 = vmatprep.subr.mxu0 0.0
        %407 = vmatpush1.xpose.msra.mxu0 0.0
        %408 = vmatprep.subr.mxu0 0.0
        %409 = vmatpush1.xpose.msra.mxu0 0.0
        %410 = vmatprep.subr.mxu0 0.0
        %411 = vmatpush1.xpose.msra.mxu0 0.0
        %412 = vmatprep.subr.mxu0 0.0
        %413 = vmatpush1.xpose.msra.mxu0 0.0
        %414 = vmatprep.subr.mxu0 0.0
        %415 = vmatpush1.xpose.msra.mxu0 0.0
        %416 = vmatprep.subr.mxu0 0.0
        %417 = vmatpush1.xpose.msra.mxu0 0.0
        %418 = vmatprep.mubr.f32.mxu0 0.0
        %419 = vmatmul.mubr.f32.gmra.mrb[0].mxu0 %v304
        %v420 = vpop.f32.mrb[0].mxu0
        %v421 = vadd.f32 0.0, %v420
        %v422 = vpop.f32.mrb[0].mxu0
        %423 = vdwg.mxu0
        %v424 = vlaneseq
        %v425 = vand.u32 %v424, 127
        %vm426 = vcmp.lt.s32.totalorder %v425, 8
        %v427 = vsel %vm426, %v421, -inf
        %428 = vmax.xlane.f32.xlu0 %v427
        %v429 = vpop.xlane.xlu0 %428
        %v430 = vsub.f32 %v427, %v429
        %v431 = vmul.f32 %v430, 1.442695
        %v432 = vpow.pop %v431
        %433 = vadd.xlane.f32.xlu0 %v432
        %v434 = vpop.xlane.xlu0 %433
        %v435 = vrcp.pop %v434
        %v436 = vmul.f32 %v434, %v435
        %v437 = vsub.f32 2.0, %v436
        %v438 = vmul.f32 %v435, %v437
        %v439 = vmul.f32 %v432, %v438
        %440 = vst [vmem:[%s198] sm:$0xff] %v439
        %s441 = sand.u32 %s114, 1
        %s442 = scalar_lea.sflag [#allocation3], %s441
        %s443 = sand.u32 %s114, 1
        %s444 = smul.addr %s443, 8
        %s445 = scalar_lea.vmem [#allocation2], %s444
        // Predicated region
        $region33: #{tpu_custom_call.1} parent=31 // pred_check
          %p446 = pneg %p124
        $region34: #{tpu_custom_call.1} parent=31 // pred_check_branch
          %448 = sbr.rel (%p446) target = $region36
        $region35: #{tpu_custom_call.1} parent=31 // pred_region
          %s450 = ssub.s32 128, 128
          %451 = vsyncadd %s442, %s450
          %s452 = sadd.s32 %s22, %s21
          %s453 = smul.addr %s452, 128
          %s454 = scalar_lea.hbm %s3, %s453
          %s456 = sshll.u32 %s445, 4
          %s457 = int_to_ptr.vmem [resolvable:$true] %s456
          %459 = dma.vmem_to_hbm [thread:$0]  %s457, 128, %s454, %s442
        $region36: #{tpu_custom_call.1} parent=31 // pred_fallthru
          _
      $region32: #{tpu_custom_call.1} parent=5 // pred_fallthru
        _
      %p460 = scmp.le.s32.totalorder 2, %s12
      // Predicated region
      $region37: #{tpu_custom_call.1} parent=5 // pred_check
        %p461 = pneg %p460
      $region38: #{tpu_custom_call.1} parent=5 // pred_check_branch
        %463 = sbr.rel (%p461) target = $region40
      $region39: #{tpu_custom_call.1} parent=5 // pred_region
        %s464 = ssub.s32 %s12, 2
        // Predicated region
        $region41: #{tpu_custom_call.1} parent=39 // pred_check
          %p465 = pneg %p130
        $region42: #{tpu_custom_call.1} parent=39 // pred_check_branch
          %467 = sbr.rel (%p465) target = $region44
        $region43: #{tpu_custom_call.1} parent=39 // pred_region
          %s468 = sand.u32 %s115, 1
          %s469 = scalar_lea.sflag [#allocation3], %s468
          %s470 = sand.u32 %s115, 1
          %s471 = smul.addr %s470, 8
          %s472 = scalar_lea.vmem [#allocation2], %s471
          %473 = dma.done %s469, 128
        $region44: #{tpu_custom_call.1} parent=39 // pred_fallthru
          _
      $region40: #{tpu_custom_call.1} parent=5 // pred_fallthru
        _
    $region6: #{tpu_custom_call.1} parent=1 // loop_footer
      %s16 = sadd.s32 1, %s12
    $region7: #{tpu_custom_call.1} parent=1 // loop_footer_branch
      %11 = sbr.rel target = $region3
    $region8: #{tpu_custom_call.1} parent=1 // loop_exit
      _
    %474 = vsyncpa [#allocation3], 1
    %s475 = scalar_lea.sflag [#allocation3], 1
    %476 = vsyncpa %s475, 1

</llo_original>
